<compile_context>
chip_gen: v5e
topology: v5e:2x2
jax: 0.10.0
libtpu: 0.0.40
codegen_flags: <defaults>
</compile_context>

<pallas_src>
import functools

import jax
import jax.numpy as jnp
from jax.experimental import pallas as pl
from jax.experimental.pallas import tpu as pltpu

EPS = 1e-5          # nn.InstanceNorm2d default eps
NEG_SLOPE = 0.01    # nn.LeakyReLU default negative_slope


def _make_kernel(Bu, G, Cin, Cout, H, W, K, KKCin_pad, use_max):
    """Fused conv -> 2x2 pool -> instance-norm -> leaky-relu kernel body."""
    HW, HhWh = H * W, (H // 2) * (W // 2)
    n_unit_in, n_unit_out = Bu * HW, Bu * HhWh
    n_step = G * n_unit_in
    KKCin = K * K * Cin
    p = K // 2

    def kernel(x_ref, w_ref, mask_ref, sel_ref, avg_ref, o_ref, im_ref):
        # x_ref:    (Cin, n_step)            bf16, lane = b*H*W + i*W + j
        # w_ref:    (Cout, KKCin_pad)        bf16, fused (ki,kj,cin) columns
        # mask_ref: (KKCin, n_step)          f32 {0,1}, per-tap in-image masks
        # sel_ref:  (n_unit_in, n_unit_out)  f32, top-left-lane -> pooled-cell
        # avg_ref:  (n_unit_out, n_unit_out) f32, block-diag 1/(Hh*Wh)
        # o_ref:    (Cout, G*n_unit_out)     f32
        # im_ref:   (KKCin_pad, n_step)      f32 VMEM im2col scratch
        x = x_ref[...].astype(jnp.float32)

        # ---- build im2col in VMEM: K*K rolled+masked views stacked on sublanes
        if KKCin_pad > KKCin:          # zero the sublane padding rows once
            im_ref[KKCin:KKCin_pad, :] = jnp.zeros(
                (KKCin_pad - KKCin, n_step), jnp.float32)
        for ki in range(K):
            for kj in range(K):
                t = ki * K + kj
                d = (ki - p) * W + (kj - p)
                xs = pltpu.roll(x, (-d) % n_step, 1) if d else x
                im_ref[t * Cin:(t + 1) * Cin, :] = (
                    xs * mask_ref[t * Cin:(t + 1) * Cin, :])

        # ---- Conv2d(padding=K//2, bias folded away): ONE bf16 MXU matmul ----
        acc = jnp.dot(w_ref[...], im_ref[...].astype(jnp.bfloat16),
                      preferred_element_type=jnp.float32)     # (Cout, n_step) f32

        # ---- 2x2/2 pooling: 3 lane rolls (XLU) + combine, then compaction ---
        # Only top-left-of-cell lanes survive the compaction matmul, and for
        # those lanes the rolls never cross an image / batch boundary.
        r1 = pltpu.roll(acc, n_step - 1, 1)          # acc[lane + 1]
        r2 = pltpu.roll(acc, n_step - W, 1)          # acc[lane + W]
        r3 = pltpu.roll(acc, n_step - W - 1, 1)      # acc[lane + W + 1]
        if use_max:
            comb = jnp.maximum(jnp.maximum(acc, r1), jnp.maximum(r2, r3))
        else:
            comb = (acc + r1) + (r2 + r3)            # sel carries the 0.25

        sel = sel_ref[...]
        avg = avg_ref[...]
        for g in range(G):                           # unrolled, static slices
            c = comb[:, g * n_unit_in:(g + 1) * n_unit_in]
            pooled = jnp.dot(c, sel, preferred_element_type=jnp.float32)

            # InstanceNorm2d(affine=False): mean and E[x^2] from one matmul.
            stats = jnp.dot(
                jnp.concatenate([pooled, pooled * pooled], axis=0), avg,
                preferred_element_type=jnp.float32)  # (2*Cout, n_unit_out)
            mean = stats[:Cout, :]
            var = jnp.maximum(stats[Cout:, :] - mean * mean, 0.0)
            y = (pooled - mean) * jax.lax.rsqrt(var + EPS)

            # LeakyReLU(0.01); 128-aligned unmasked store.
            o_ref[:, g * n_unit_out:(g + 1) * n_unit_out] = jnp.where(
                y >= 0.0, y, NEG_SLOPE * y)

    return kernel


def _tap_masks(Cin, H, W, K, n_step):
    """(K*K*Cin, n_step) {0,1} in-image masks for each conv tap (f32)."""
    p = K // 2
    pos = jnp.arange(n_step) % (H * W)
    r, c = pos // W, pos % W
    rows = []
    for ki in range(K):
        for kj in range(K):
            di, dj = ki - p, kj - p
            ok = ((r + di >= 0) & (r + di < H) &
                  (c + dj >= 0) & (c + dj < W)).astype(jnp.float32)
            rows.append(jnp.broadcast_to(ok[None, :], (Cin, n_step)))
    return jnp.concatenate(rows, axis=0)


def _pool_matrices(Bu, H, W, use_max):
    """Top-left-lane compaction selector and per-batch averaging matrix (f32)."""
    Hh, Wh = H // 2, W // 2
    n_in, n_out = Bu * H * W, Bu * Hh * Wh
    l = jnp.arange(n_in)
    b, r = l // (H * W), l % (H * W)
    i, j = r // W, r % W
    topleft = (i % 2 == 0) & (j % 2 == 0)
    tgt = b * (Hh * Wh) + (i // 2) * Wh + (j // 2)
    onehot = (tgt[:, None] == jnp.arange(n_out)[None, :]) & topleft[:, None]
    sel = onehot.astype(jnp.float32) * (1.0 if use_max else 0.25)

    m = jnp.arange(n_out)
    same = (m[:, None] // (Hh * Wh)) == (m[None, :] // (Hh * Wh))
    avg = same.astype(jnp.float32) / float(Hh * Wh)
    return sel, avg


def _forward_impl(x, w, K, use_max):
    """x: (B, Cin, H, W) f32, w: (Cout, Cin, K, K). Returns (B, Cout, H//2, W//2)."""
    B, Cin, H, W = x.shape
    Cout = w.shape[0]
    assert K % 2 == 1, "odd kernel size expected (padding = K // 2)"
    assert H % 2 == 0 and W % 2 == 0, "2x2 pool expects even spatial dims"
    Hh, Wh = H // 2, W // 2
    HW, HhWh = H * W, Hh * Wh
    KKCin = K * K * Cin
    KKCin_pad = -(-KKCin // 8) * 8        # sublane-pad the im2col contraction dim

    # --- batch tiling: `Bu` batch elements form one lane-aligned "unit" ------
    Bu = 1
    while (Bu * HhWh) % 128 != 0 and Bu < B:
        Bu += 1
    if (Bu * HhWh) % 128 != 0 or B % Bu != 0:
        Bu = B                             # fallback: whole batch in one step
    units = B // Bu

    def _step_vmem_bytes(g):
        n_step, n_out = g * Bu * HW, g * Bu * HhWh
        return (2 * Cin * n_step * 2              # x block (bf16, double-buffered)
                + 2 * KKCin_pad * n_step * 4      # tap masks (f32)
                + 2 * Cout * KKCin_pad * 2        # fused weights (bf16)
                + 2 * (Bu * HW) * (Bu * HhWh) * 4 # pool compaction matrix
                + 2 * (Bu * HhWh) ** 2 * 4        # averaging matrix
                + 2 * Cout * n_out * 4            # output block
                + KKCin_pad * n_step * 4)         # im2col scratch

    # Units per grid step: target ~512 output lanes per step (wide unmasked
    # stores, amortized pipeline overhead), keep >= 2 grid steps when possible
    # so v7x's second TensorCore gets work, and bound the per-step VMEM use.
    G = max(1, min(units, -(-512 // (Bu * HhWh))))
    while units % G:
        G -= 1
    if units >= 2 and units // G < 2:
        G = max(1, units // 2)
        while units % G:
            G -= 1
    while G > 1 and _step_vmem_bytes(G) > 24 * 1024 * 1024:
        G -= 1
        while units % G:
            G -= 1
    nsteps = units // G
    n_step, n_out_step = G * Bu * HW, G * Bu * HhWh

    # --- host-side layout plumbing (lane-dense) ------------------------------
    x_ln = (jnp.transpose(x, (1, 0, 2, 3)).reshape(Cin, B * HW)
            .astype(jnp.bfloat16))                            # bf16 halves x DMA
    w_f = jnp.transpose(w, (0, 2, 3, 1)).reshape(Cout, KKCin)
    w_f = jnp.pad(w_f, ((0, 0), (0, KKCin_pad - KKCin))).astype(jnp.bfloat16)
    masks = _tap_masks(Cin, H, W, K, n_step)                  # grid-invariant
    sel, avg = _pool_matrices(Bu, H, W, use_max)              # grid-invariant

    kernel = _make_kernel(Bu, G, Cin, Cout, H, W, K, KKCin_pad, use_max)
    vmem_limit = int(min(max(2 * _step_vmem_bytes(G), 32 * 1024 * 1024),
                         96 * 1024 * 1024))

    out = pl.pallas_call(
        kernel,
        out_shape=jax.ShapeDtypeStruct((Cout, B * HhWh), jnp.float32),
        grid_spec=pltpu.PrefetchScalarGridSpec(
            num_scalar_prefetch=0,
            grid=(nsteps,),
            in_specs=[
                pl.BlockSpec((Cin, n_step), lambda s: (0, s)),
                pl.BlockSpec((Cout, KKCin_pad), lambda s: (0, 0)),
                pl.BlockSpec((KKCin, n_step), lambda s: (0, 0)),
                pl.BlockSpec((Bu * HW, Bu * HhWh), lambda s: (0, 0)),
                pl.BlockSpec((Bu * HhWh, Bu * HhWh), lambda s: (0, 0)),
            ],
            out_specs=pl.BlockSpec((Cout, n_out_step), lambda s: (0, s)),
            scratch_shapes=[pltpu.VMEM((KKCin_pad, n_step), jnp.float32)],
        ),
        compiler_params=pltpu.CompilerParams(
            dimension_semantics=("parallel",),
            vmem_limit_bytes=vmem_limit),
    )(x_ln, w_f, masks, sel, avg)

    # (Cout, B*Hh*Wh) -> (B, Cout, Hh, Wh)
    return out.reshape(Cout, B, Hh, Wh).transpose(1, 0, 2, 3)


@functools.partial(jax.jit, static_argnames=("kernel", "pool_type"))
def cnn_maxpool2d_forward(x, w, b, kernel, pool_type="max"):
    """Eval-mode forward of CNNMaxPool2d."""
    assert pool_type in ("avg", "max")
    # Faithful to the original module: `pool_type == max` compares a string to
    # the Python builtin `max`, so it is always False and the AvgPool2d branch
    # is always taken, whatever pool_type says.
    use_max = (pool_type == max)
    # Conv bias is intentionally unused: InstanceNorm2d(affine=False) right
    # after the 2x2 pool cancels any per-channel constant exactly (for both
    # avg and max pooling), so dropping it is a free DMA/VPU saving.
    del b
    return _forward_impl(x, w, kernel, use_max)


def _reference_forward(x, w, b, K, use_max):
    """Pure-JAX reference of the PyTorch forward (eval mode)."""
    p = K // 2
    y = jax.lax.conv_general_dilated(
        x, w, window_strides=(1, 1), padding=[(p, p), (p, p)],
        dimension_numbers=("NCHW", "OIHW", "NCHW"))
    y = y + b[None, :, None, None]
    Bn, C, H, W = y.shape
    y = y.reshape(Bn, C, H // 2, 2, W // 2, 2)
    y = jnp.max(y, axis=(3, 5)) if use_max else jnp.mean(y, axis=(3, 5))
    mean = jnp.mean(y, axis=(2, 3), keepdims=True)
    var = jnp.mean((y - mean) ** 2, axis=(2, 3), keepdims=True)
    y = (y - mean) * jax.lax.rsqrt(var + EPS)
    return jnp.where(y >= 0.0, y, NEG_SLOPE * y)


if __name__ == "__main__":
    B, Cin, Cout, H, W, K = 2, 4, 8, 16, 16, 3

    key = jax.random.PRNGKey(0)
    kx, kw, kb = jax.random.split(key, 3)
    x = jax.random.normal(kx, (B, Cin, H, W), dtype=jnp.float32)
    fan_in = Cin * K * K
    w = jax.random.normal(kw, (Cout, Cin, K, K), dtype=jnp.float32) / jnp.sqrt(fan_in)
    b = jax.random.normal(kb, (Cout,), dtype=jnp.float32) * 0.1

    # Default construction (pool_type='max') -> the original module still runs
    # AvgPool2d because of its `pool_type == max` dispatch bug.
    out = cnn_maxpool2d_forward(x, w, b, K, pool_type="max")
    out = jax.block_until_ready(out)
    ref = _reference_forward(x, w, b, K, use_max=False)
    assert out.shape == (B, Cout, H // 2, W // 2)
    # Kernel uses bf16 MXU operands (per perf review); the XLA reference runs at
    # TPU default (bf16-pass) conv precision -> 2e-2 tolerances.
    err = jnp.max(jnp.abs(out - ref))
    assert jnp.allclose(out, ref, atol=2e-2, rtol=2e-2), \
        f"avg-pool path: max abs err {err}"

    # Directly exercise the (otherwise unreachable) max-pool kernel path too.
    out_max = jax.jit(functools.partial(_forward_impl, K=K, use_max=True))(x, w)
    out_max = jax.block_until_ready(out_max)
    ref_max = _reference_forward(x, w, b, K, use_max=True)
    err_max = jnp.max(jnp.abs(out_max - ref_max))
    assert jnp.allclose(out_max, ref_max, atol=2e-2, rtol=2e-2), \
        f"max-pool path: max abs err {err_max}"

    print("KERNEL_OK")
</pallas_src>

<mosaic_0001>
module attributes {stable_mosaic.version = 11 : i64} {
  func.func @kernel(%arg0: i32, %arg1: memref<4x512xbf16, #tpu.memory_space<vmem>>, %arg2: memref<8x40xbf16, #tpu.memory_space<vmem>>, %arg3: memref<36x512xf32, #tpu.memory_space<vmem>>, %arg4: memref<512x128xf32, #tpu.memory_space<vmem>>, %arg5: memref<128x128xf32, #tpu.memory_space<vmem>>, %arg6: memref<8x128xf32, #tpu.memory_space<vmem>>, %arg7: memref<40x512xf32, #tpu.memory_space<vmem>>) attributes {dimension_semantics = [#tpu.dimension_semantics<parallel>], iteration_bounds = array<i64: 1>, scalar_prefetch = 0 : i64, scratch_operands = 1 : i64, tpu.core_type = #tpu.core_type<tc>, window_params = [{transform_indices = @transform_0, window_bounds = array<i64: 4, 512>}, {pipeline_mode = #tpu.pipeline_mode<synchronous>, transform_indices = @transform_1, window_bounds = array<i64: 8, 40>}, {pipeline_mode = #tpu.pipeline_mode<synchronous>, transform_indices = @transform_2, window_bounds = array<i64: 36, 512>}, {pipeline_mode = #tpu.pipeline_mode<synchronous>, transform_indices = @transform_3, window_bounds = array<i64: 512, 128>}, {pipeline_mode = #tpu.pipeline_mode<synchronous>, transform_indices = @transform_4, window_bounds = array<i64: 128, 128>}, {transform_indices = @transform_5, window_bounds = array<i64: 8, 128>}]} {
    %c0 = arith.constant 0 : index
    %c0_0 = arith.constant 0 : index
    %0 = vector.load %arg1[%c0, %c0_0] : memref<4x512xbf16, #tpu.memory_space<vmem>>, vector<4x512xbf16>
    %1 = arith.extf %0 : vector<4x512xbf16> to vector<4x512xf32>
    %cst = arith.constant 0.000000e+00 : f32
    %2 = vector.broadcast %cst : f32 to vector<4x512xf32>
    %c36 = arith.constant 36 : index
    %c0_1 = arith.constant 0 : index
    %3 = vector.load %arg7[%c36, %c0_1] : memref<40x512xf32, #tpu.memory_space<vmem>>, vector<4x512xf32>
    tpu.vector_store %arg7[%c36, %c0_1], %2 {strides = array<i32>} : memref<40x512xf32, #tpu.memory_space<vmem>>, vector<4x512xf32>,
    %c17_i32 = arith.constant 17 : i32
    %4 = tpu.dynamic_rotate %1 by %c17_i32 dim 1 : vector<4x512xf32>, i32 -> vector<4x512xf32>
    %c0_2 = arith.constant 0 : index
    %c0_3 = arith.constant 0 : index
    %5 = vector.load %arg3[%c0_2, %c0_3] : memref<36x512xf32, #tpu.memory_space<vmem>>, vector<4x512xf32>
    %6 = arith.mulf %4, %5 : vector<4x512xf32>
    %c0_4 = arith.constant 0 : index
    %c0_5 = arith.constant 0 : index
    %7 = vector.load %arg7[%c0_4, %c0_5] : memref<40x512xf32, #tpu.memory_space<vmem>>, vector<4x512xf32>
    tpu.vector_store %arg7[%c0_4, %c0_5], %6 {strides = array<i32>} : memref<40x512xf32, #tpu.memory_space<vmem>>, vector<4x512xf32>,
    %c16_i32 = arith.constant 16 : i32
    %8 = tpu.dynamic_rotate %1 by %c16_i32 dim 1 : vector<4x512xf32>, i32 -> vector<4x512xf32>
    %c4 = arith.constant 4 : index
    %c0_6 = arith.constant 0 : index
    %9 = vector.load %arg3[%c4, %c0_6] : memref<36x512xf32, #tpu.memory_space<vmem>>, vector<4x512xf32>
    %10 = arith.mulf %8, %9 : vector<4x512xf32>
    %c4_7 = arith.constant 4 : index
    %c0_8 = arith.constant 0 : index
    %11 = vector.load %arg7[%c4_7, %c0_8] : memref<40x512xf32, #tpu.memory_space<vmem>>, vector<4x512xf32>
    tpu.vector_store %arg7[%c4_7, %c0_8], %10 {strides = array<i32>} : memref<40x512xf32, #tpu.memory_space<vmem>>, vector<4x512xf32>,
    %c15_i32 = arith.constant 15 : i32
    %12 = tpu.dynamic_rotate %1 by %c15_i32 dim 1 : vector<4x512xf32>, i32 -> vector<4x512xf32>
    %c8 = arith.constant 8 : index
    %c0_9 = arith.constant 0 : index
    %13 = vector.load %arg3[%c8, %c0_9] : memref<36x512xf32, #tpu.memory_space<vmem>>, vector<4x512xf32>
    %14 = arith.mulf %12, %13 : vector<4x512xf32>
    %c8_10 = arith.constant 8 : index
    %c0_11 = arith.constant 0 : index
    %15 = vector.load %arg7[%c8_10, %c0_11] : memref<40x512xf32, #tpu.memory_space<vmem>>, vector<4x512xf32>
    tpu.vector_store %arg7[%c8_10, %c0_11], %14 {strides = array<i32>} : memref<40x512xf32, #tpu.memory_space<vmem>>, vector<4x512xf32>,
    %c1_i32 = arith.constant 1 : i32
    %16 = tpu.dynamic_rotate %1 by %c1_i32 dim 1 : vector<4x512xf32>, i32 -> vector<4x512xf32>
    %c12 = arith.constant 12 : index
    %c0_12 = arith.constant 0 : index
    %17 = vector.load %arg3[%c12, %c0_12] : memref<36x512xf32, #tpu.memory_space<vmem>>, vector<4x512xf32>
    %18 = arith.mulf %16, %17 : vector<4x512xf32>
    %c12_13 = arith.constant 12 : index
    %c0_14 = arith.constant 0 : index
    %19 = vector.load %arg7[%c12_13, %c0_14] : memref<40x512xf32, #tpu.memory_space<vmem>>, vector<4x512xf32>
    tpu.vector_store %arg7[%c12_13, %c0_14], %18 {strides = array<i32>} : memref<40x512xf32, #tpu.memory_space<vmem>>, vector<4x512xf32>,
    %c16 = arith.constant 16 : index
    %c0_15 = arith.constant 0 : index
    %20 = vector.load %arg3[%c16, %c0_15] : memref<36x512xf32, #tpu.memory_space<vmem>>, vector<4x512xf32>
    %21 = arith.mulf %1, %20 : vector<4x512xf32>
    %c16_16 = arith.constant 16 : index
    %c0_17 = arith.constant 0 : index
    %22 = vector.load %arg7[%c16_16, %c0_17] : memref<40x512xf32, #tpu.memory_space<vmem>>, vector<4x512xf32>
    tpu.vector_store %arg7[%c16_16, %c0_17], %21 {strides = array<i32>} : memref<40x512xf32, #tpu.memory_space<vmem>>, vector<4x512xf32>,
    %c511_i32 = arith.constant 511 : i32
    %23 = tpu.dynamic_rotate %1 by %c511_i32 dim 1 : vector<4x512xf32>, i32 -> vector<4x512xf32>
    %c20 = arith.constant 20 : index
    %c0_18 = arith.constant 0 : index
    %24 = vector.load %arg3[%c20, %c0_18] : memref<36x512xf32, #tpu.memory_space<vmem>>, vector<4x512xf32>
    %25 = arith.mulf %23, %24 : vector<4x512xf32>
    %c20_19 = arith.constant 20 : index
    %c0_20 = arith.constant 0 : index
    %26 = vector.load %arg7[%c20_19, %c0_20] : memref<40x512xf32, #tpu.memory_space<vmem>>, vector<4x512xf32>
    tpu.vector_store %arg7[%c20_19, %c0_20], %25 {strides = array<i32>} : memref<40x512xf32, #tpu.memory_space<vmem>>, vector<4x512xf32>,
    %c497_i32 = arith.constant 497 : i32
    %27 = tpu.dynamic_rotate %1 by %c497_i32 dim 1 : vector<4x512xf32>, i32 -> vector<4x512xf32>
    %c24 = arith.constant 24 : index
    %c0_21 = arith.constant 0 : index
    %28 = vector.load %arg3[%c24, %c0_21] : memref<36x512xf32, #tpu.memory_space<vmem>>, vector<4x512xf32>
    %29 = arith.mulf %27, %28 : vector<4x512xf32>
    %c24_22 = arith.constant 24 : index
    %c0_23 = arith.constant 0 : index
    %30 = vector.load %arg7[%c24_22, %c0_23] : memref<40x512xf32, #tpu.memory_space<vmem>>, vector<4x512xf32>
    tpu.vector_store %arg7[%c24_22, %c0_23], %29 {strides = array<i32>} : memref<40x512xf32, #tpu.memory_space<vmem>>, vector<4x512xf32>,
    %c496_i32 = arith.constant 496 : i32
    %31 = tpu.dynamic_rotate %1 by %c496_i32 dim 1 : vector<4x512xf32>, i32 -> vector<4x512xf32>
    %c28 = arith.constant 28 : index
    %c0_24 = arith.constant 0 : index
    %32 = vector.load %arg3[%c28, %c0_24] : memref<36x512xf32, #tpu.memory_space<vmem>>, vector<4x512xf32>
    %33 = arith.mulf %31, %32 : vector<4x512xf32>
    %c28_25 = arith.constant 28 : index
    %c0_26 = arith.constant 0 : index
    %34 = vector.load %arg7[%c28_25, %c0_26] : memref<40x512xf32, #tpu.memory_space<vmem>>, vector<4x512xf32>
    tpu.vector_store %arg7[%c28_25, %c0_26], %33 {strides = array<i32>} : memref<40x512xf32, #tpu.memory_space<vmem>>, vector<4x512xf32>,
    %c495_i32 = arith.constant 495 : i32
    %35 = tpu.dynamic_rotate %1 by %c495_i32 dim 1 : vector<4x512xf32>, i32 -> vector<4x512xf32>
    %c32 = arith.constant 32 : index
    %c0_27 = arith.constant 0 : index
    %36 = vector.load %arg3[%c32, %c0_27] : memref<36x512xf32, #tpu.memory_space<vmem>>, vector<4x512xf32>
    %37 = arith.mulf %35, %36 : vector<4x512xf32>
    %c32_28 = arith.constant 32 : index
    %c0_29 = arith.constant 0 : index
    %38 = vector.load %arg7[%c32_28, %c0_29] : memref<40x512xf32, #tpu.memory_space<vmem>>, vector<4x512xf32>
    tpu.vector_store %arg7[%c32_28, %c0_29], %37 {strides = array<i32>} : memref<40x512xf32, #tpu.memory_space<vmem>>, vector<4x512xf32>,
    %c0_30 = arith.constant 0 : index
    %c0_31 = arith.constant 0 : index
    %39 = vector.load %arg2[%c0_30, %c0_31] : memref<8x40xbf16, #tpu.memory_space<vmem>>, vector<8x40xbf16>
    %c0_32 = arith.constant 0 : index
    %c0_33 = arith.constant 0 : index
    %40 = vector.load %arg7[%c0_32, %c0_33] : memref<40x512xf32, #tpu.memory_space<vmem>>, vector<40x512xf32>
    %41 = arith.truncf %40 : vector<40x512xf32> to vector<40x512xbf16>
    %cst_34 = arith.constant dense<0.000000e+00> : vector<8x512xf32>
    %42 = tpu.matmul %39, %41, %cst_34 {dimension_numbers = #tpu.dot_dimension_numbers<[1], [0], [0], [1], [0, 0, 1, 1], [], []>} : vector<8x40xbf16>, vector<40x512xbf16>, vector<8x512xf32> -> vector<8x512xf32>
    %c511_i32_35 = arith.constant 511 : i32
    %43 = tpu.dynamic_rotate %42 by %c511_i32_35 dim 1 : vector<8x512xf32>, i32 -> vector<8x512xf32>
    %c496_i32_36 = arith.constant 496 : i32
    %44 = tpu.dynamic_rotate %42 by %c496_i32_36 dim 1 : vector<8x512xf32>, i32 -> vector<8x512xf32>
    %c495_i32_37 = arith.constant 495 : i32
    %45 = tpu.dynamic_rotate %42 by %c495_i32_37 dim 1 : vector<8x512xf32>, i32 -> vector<8x512xf32>
    %46 = arith.addf %42, %43 : vector<8x512xf32>
    %47 = arith.addf %44, %45 : vector<8x512xf32>
    %48 = arith.addf %46, %47 : vector<8x512xf32>
    %c0_38 = arith.constant 0 : index
    %c0_39 = arith.constant 0 : index
    %49 = vector.load %arg4[%c0_38, %c0_39] : memref<512x128xf32, #tpu.memory_space<vmem>>, vector<512x128xf32>
    %c0_40 = arith.constant 0 : index
    %c0_41 = arith.constant 0 : index
    %50 = vector.load %arg5[%c0_40, %c0_41] : memref<128x128xf32, #tpu.memory_space<vmem>>, vector<128x128xf32>
    %cst_42 = arith.constant dense<0.000000e+00> : vector<8x128xf32>
    %51 = tpu.matmul %48, %49, %cst_42 {dimension_numbers = #tpu.dot_dimension_numbers<[1], [0], [0], [1], [0, 0, 1, 1], [], []>} : vector<8x512xf32>, vector<512x128xf32>, vector<8x128xf32> -> vector<8x128xf32>
    %52 = arith.mulf %51, %51 : vector<8x128xf32>
    %53 = tpu.concatenate %51, %52 in 0 : vector<8x128xf32>, vector<8x128xf32> -> vector<16x128xf32>
    %cst_43 = arith.constant dense<0.000000e+00> : vector<16x128xf32>
    %54 = tpu.matmul %53, %50, %cst_43 {dimension_numbers = #tpu.dot_dimension_numbers<[1], [0], [0], [1], [0, 0, 1, 1], [], []>} : vector<16x128xf32>, vector<128x128xf32>, vector<16x128xf32> -> vector<16x128xf32>
    %55 = vector.extract_strided_slice %54 {offsets = [0, 0], sizes = [8, 128], strides = [1, 1]} : vector<16x128xf32> to vector<8x128xf32>
    %56 = vector.extract_strided_slice %54 {offsets = [8, 0], sizes = [8, 128], strides = [1, 1]} : vector<16x128xf32> to vector<8x128xf32>
    %57 = arith.mulf %55, %55 : vector<8x128xf32>
    %58 = arith.subf %56, %57 : vector<8x128xf32>
    %cst_44 = arith.constant 0.000000e+00 : f32
    %59 = vector.broadcast %cst_44 : f32 to vector<8x128xf32>
    %60 = arith.maximumf %58, %59 : vector<8x128xf32>
    %61 = arith.subf %51, %55 : vector<8x128xf32>
    %cst_45 = arith.constant 9.99999974E-6 : f32
    %62 = vector.broadcast %cst_45 : f32 to vector<8x128xf32>
    %63 = arith.addf %60, %62 : vector<8x128xf32>
    %64 = math.rsqrt %63 : vector<8x128xf32>
    %65 = arith.mulf %61, %64 : vector<8x128xf32>
    %cst_46 = arith.constant 0.000000e+00 : f32
    %66 = vector.broadcast %cst_46 : f32 to vector<8x128xf32>
    %67 = arith.cmpf oge, %65, %66 : vector<8x128xf32>
    %cst_47 = arith.constant 0.00999999977 : f32
    %68 = vector.broadcast %cst_47 : f32 to vector<8x128xf32>
    %69 = arith.mulf %68, %65 : vector<8x128xf32>
    %70 = arith.select %67, %65, %69 : vector<8x128xi1>, vector<8x128xf32>
    %c0_48 = arith.constant 0 : index
    %c0_49 = arith.constant 0 : index
    %71 = vector.load %arg6[%c0_48, %c0_49] : memref<8x128xf32, #tpu.memory_space<vmem>>, vector<8x128xf32>
    tpu.vector_store %arg6[%c0_48, %c0_49], %70 {strides = array<i32>} : memref<8x128xf32, #tpu.memory_space<vmem>>, vector<8x128xf32>,
    return
  }
  func.func @transform_0(%arg0: i32) -> (i32, i32) {
    %c0_i32 = arith.constant 0 : i32
    %c0_i32_0 = arith.constant 0 : i32
    return %c0_i32, %arg0 : i32, i32
  }
  func.func @transform_1(%arg0: i32) -> (i32, i32) {
    %c0_i32 = arith.constant 0 : i32
    %c0_i32_0 = arith.constant 0 : i32
    %c0_i32_1 = arith.constant 0 : i32
    return %c0_i32, %c0_i32_0 : i32, i32
  }
  func.func @transform_2(%arg0: i32) -> (i32, i32) {
    %c0_i32 = arith.constant 0 : i32
    %c0_i32_0 = arith.constant 0 : i32
    %c0_i32_1 = arith.constant 0 : i32
    return %c0_i32, %c0_i32_0 : i32, i32
  }
  func.func @transform_3(%arg0: i32) -> (i32, i32) {
    %c0_i32 = arith.constant 0 : i32
    %c0_i32_0 = arith.constant 0 : i32
    %c0_i32_1 = arith.constant 0 : i32
    return %c0_i32, %c0_i32_0 : i32, i32
  }
  func.func @transform_4(%arg0: i32) -> (i32, i32) {
    %c0_i32 = arith.constant 0 : i32
    %c0_i32_0 = arith.constant 0 : i32
    %c0_i32_1 = arith.constant 0 : i32
    return %c0_i32, %c0_i32_0 : i32, i32
  }
  func.func @transform_5(%arg0: i32) -> (i32, i32) {
    %c0_i32 = arith.constant 0 : i32
    %c0_i32_0 = arith.constant 0 : i32
    return %c0_i32, %arg0 : i32, i32
  }
}

</mosaic_0001>

<llo_original>
// kernel: cnn_maxpool2d_forward.1
$region0: #{cnn_maxpool2d_forward.1}
  #allocation0 [shape = 'u32[]', space=smem, size = 0x4, offset = 0x4, fixed_abs, tag = 'smem constant byte address 0x4 - core index']
  #allocation1 [shape = 'u32[72,128]{1,0:T(1,128)}', space=vmem, size = 0x9000, scoped, tag = 'internal scratch']
  #allocation2 [shape = 'f32[40,512]{1,0:T(8,128)}', space=vmem, size = 0x14000, scoped, tag = 'scratch operand']
  %s0 = inlined_call_operand.vmem [shape: bf16[4,512], index: 0, kind: input, shape index: {}]
  %s1 = inlined_call_operand.vmem [shape: bf16[8,40], index: 1, kind: input, shape index: {}]
  %s2 = inlined_call_operand.vmem [shape: f32[36,512], index: 2, kind: input, shape index: {}]
  %s3 = inlined_call_operand.vmem [shape: f32[512,128], index: 3, kind: input, shape index: {}]
  %s4 = inlined_call_operand.vmem [shape: f32[128,128], index: 4, kind: input, shape index: {}]
  %s5 = inlined_call_operand.vmem [shape: f32[8,128], index: 5, kind: output, shape index: {}]
  %s6 = sld [smem:[#allocation0]]
  $region30: #{cnn_maxpool2d_forward.1} parent=0
    _
  %s8 = ssub.s32 1, %s6
  %s9 = scalar_select 0, %s8, %s6
  // Predicated region
  $region2: #{cnn_maxpool2d_forward.1} parent=0 // pred_check
    _
  $region3: #{cnn_maxpool2d_forward.1} parent=0 // pred_check_branch
    %11 = sbr.rel (0) target = $region5
  $region4: #{cnn_maxpool2d_forward.1} parent=0 // pred_region
    _
  $region5: #{cnn_maxpool2d_forward.1} parent=0 // pred_fallthru
    _
  // Predicated region
  $region6: #{cnn_maxpool2d_forward.1} parent=0 // pred_check
    _
  $region7: #{cnn_maxpool2d_forward.1} parent=0 // pred_check_branch
    %13 = sbr.rel (0) target = $region9
  $region8: #{cnn_maxpool2d_forward.1} parent=0 // pred_region
    _
  $region9: #{cnn_maxpool2d_forward.1} parent=0 // pred_fallthru
    _
  // Predicated region
  $region10: #{cnn_maxpool2d_forward.1} parent=0 // pred_check
    _
  $region11: #{cnn_maxpool2d_forward.1} parent=0 // pred_check_branch
    %15 = sbr.rel (0) target = $region13
  $region12: #{cnn_maxpool2d_forward.1} parent=0 // pred_region
    _
  $region13: #{cnn_maxpool2d_forward.1} parent=0 // pred_fallthru
    _
  // Predicated region
  $region14: #{cnn_maxpool2d_forward.1} parent=0 // pred_check
    _
  $region15: #{cnn_maxpool2d_forward.1} parent=0 // pred_check_branch
    %17 = sbr.rel (0) target = $region17
  $region16: #{cnn_maxpool2d_forward.1} parent=0 // pred_region
    _
  $region17: #{cnn_maxpool2d_forward.1} parent=0 // pred_fallthru
    _
  // Predicated region
  $region18: #{cnn_maxpool2d_forward.1} parent=0 // pred_check
    _
  $region19: #{cnn_maxpool2d_forward.1} parent=0 // pred_check_branch
    %19 = sbr.rel (0) target = $region21
  $region20: #{cnn_maxpool2d_forward.1} parent=0 // pred_region
    _
  $region21: #{cnn_maxpool2d_forward.1} parent=0 // pred_fallthru
    _
  %v21 = vld [vmem:[%s0] sm:$0xff]
  %v22 = vunpack.c.l.bf16 %v21
  %v23 = vunpack.c.h.bf16 %v21
  %24 = vst [vmem:[#allocation2 + $0x80] sm:$0xf0] 0.0
  %25 = vst [vmem:[#allocation2 + $0x88] sm:$0xf0] 0.0
  %26 = vst [vmem:[#allocation2 + $0x90] sm:$0xf0] 0.0
  %27 = vst [vmem:[#allocation2 + $0x98] sm:$0xf0] 0.0
  %30 = vst [vmem:[#allocation1] ss:$2 sm:$0xff] %v22
  %s31 = scalar_lea.vmem [#allocation1], 16
  %32 = vst [vmem:[%s31] ss:$2 sm:$0xff] %v23
  %v33 = vld.sshfl [vmem:[#allocation1] sm:$0xff pattern:$0x75316420]
  %v34 = vld.sshfl [vmem:[#allocation1 + $0x8] sm:$0xff pattern:$0x75316420]
  %v35 = vld.sshfl [vmem:[#allocation1 + $0x10] sm:$0xff pattern:$0x75316420]
  %v36 = vld.sshfl [vmem:[#allocation1 + $0x18] sm:$0xff pattern:$0x75316420]
  %41 = vrot.lane.b32.xlu0 %v33, 17
  %v42 = vpop.permute.xlu0 %41
  %43 = vrot.lane.b32.xlu0 %v34, 17
  %v44 = vpop.permute.xlu0 %43
  %45 = vrot.lane.b32.xlu0 %v35, 17
  %v46 = vpop.permute.xlu0 %45
  %47 = vrot.lane.b32.xlu0 %v36, 17
  %v48 = vpop.permute.xlu0 %47
  %v49 = vlaneseq
  %v50 = vand.u32 %v49, 127
  %vm51 = vcmp.lt.s32.totalorder %v50, 17
  %v52 = vsel %vm51, %v46, %v48
  %v53 = vsel %vm51, %v44, %v46
  %v54 = vsel %vm51, %v42, %v44
  %v55 = vsel %vm51, %v48, %v42
  %v56 = vld [vmem:[%s2] sm:$0xf]
  %v57 = vld [vmem:[%s2 + $0x8] sm:$0xf]
  %v58 = vld [vmem:[%s2 + $0x10] sm:$0xf]
  %v59 = vld [vmem:[%s2 + $0x18] sm:$0xf]
  %v60 = vmul.f32 %v55, %v56
  %v61 = vmul.f32 %v54, %v57
  %v62 = vmul.f32 %v53, %v58
  %v63 = vmul.f32 %v52, %v59
  %64 = vst [vmem:[#allocation2] sm:$0xf] %v60
  %65 = vst [vmem:[#allocation2 + $0x8] sm:$0xf] %v61
  %66 = vst [vmem:[#allocation2 + $0x10] sm:$0xf] %v62
  %67 = vst [vmem:[#allocation2 + $0x18] sm:$0xf] %v63
  %68 = vst [vmem:[#allocation1] ss:$2 sm:$0xff] %v22
  %s69 = scalar_lea.vmem [#allocation1], 16
  %70 = vst [vmem:[%s69] ss:$2 sm:$0xff] %v23
  %v71 = vld.sshfl [vmem:[#allocation1] sm:$0xff pattern:$0x75316420]
  %v72 = vld.sshfl [vmem:[#allocation1 + $0x8] sm:$0xff pattern:$0x75316420]
  %v73 = vld.sshfl [vmem:[#allocation1 + $0x10] sm:$0xff pattern:$0x75316420]
  %v74 = vld.sshfl [vmem:[#allocation1 + $0x18] sm:$0xff pattern:$0x75316420]
  %79 = vrot.lane.b32.xlu0 %v71, 16
  %v80 = vpop.permute.xlu0 %79
  %81 = vrot.lane.b32.xlu0 %v72, 16
  %v82 = vpop.permute.xlu0 %81
  %83 = vrot.lane.b32.xlu0 %v73, 16
  %v84 = vpop.permute.xlu0 %83
  %85 = vrot.lane.b32.xlu0 %v74, 16
  %v86 = vpop.permute.xlu0 %85
  %vm87 = vcmp.lt.s32.totalorder %v50, 16
  %v88 = vsel %vm87, %v84, %v86
  %v89 = vsel %vm87, %v82, %v84
  %v90 = vsel %vm87, %v80, %v82
  %v91 = vsel %vm87, %v86, %v80
  %v92 = vld [vmem:[%s2] sm:$0xf0]
  %v93 = vld [vmem:[%s2 + $0x8] sm:$0xf0]
  %v94 = vld [vmem:[%s2 + $0x10] sm:$0xf0]
  %v95 = vld [vmem:[%s2 + $0x18] sm:$0xf0]
  %v100 = vrot.slane %v92, 4
  %v101 = vrot.slane %v93, 4
  %v102 = vrot.slane %v94, 4
  %v103 = vrot.slane %v95, 4
  %v108 = vmul.f32 %v91, %v100
  %v109 = vmul.f32 %v90, %v101
  %v110 = vmul.f32 %v89, %v102
  %v111 = vmul.f32 %v88, %v103
  %v116 = vrot.slane %v108, 4
  %v117 = vrot.slane %v109, 4
  %v118 = vrot.slane %v110, 4
  %v119 = vrot.slane %v111, 4
  %124 = vst [vmem:[#allocation2] sm:$0xf0] %v116
  %125 = vst [vmem:[#allocation2 + $0x8] sm:$0xf0] %v117
  %126 = vst [vmem:[#allocation2 + $0x10] sm:$0xf0] %v118
  %127 = vst [vmem:[#allocation2 + $0x18] sm:$0xf0] %v119
  %128 = vst [vmem:[#allocation1] ss:$2 sm:$0xff] %v22
  %s129 = scalar_lea.vmem [#allocation1], 16
  %130 = vst [vmem:[%s129] ss:$2 sm:$0xff] %v23
  %v131 = vld.sshfl [vmem:[#allocation1] sm:$0xff pattern:$0x75316420]
  %v132 = vld.sshfl [vmem:[#allocation1 + $0x8] sm:$0xff pattern:$0x75316420]
  %v133 = vld.sshfl [vmem:[#allocation1 + $0x10] sm:$0xff pattern:$0x75316420]
  %v134 = vld.sshfl [vmem:[#allocation1 + $0x18] sm:$0xff pattern:$0x75316420]
  %139 = vrot.lane.b32.xlu0 %v131, 15
  %v140 = vpop.permute.xlu0 %139
  %141 = vrot.lane.b32.xlu0 %v132, 15
  %v142 = vpop.permute.xlu0 %141
  %143 = vrot.lane.b32.xlu0 %v133, 15
  %v144 = vpop.permute.xlu0 %143
  %145 = vrot.lane.b32.xlu0 %v134, 15
  %v146 = vpop.permute.xlu0 %145
  %vm147 = vcmp.lt.s32.totalorder %v50, 15
  %v148 = vsel %vm147, %v144, %v146
  %v149 = vsel %vm147, %v142, %v144
  %v150 = vsel %vm147, %v140, %v142
  %v151 = vsel %vm147, %v146, %v140
  %v152 = vld [vmem:[%s2 + $0x20] sm:$0xf]
  %v153 = vld [vmem:[%s2 + $0x28] sm:$0xf]
  %v154 = vld [vmem:[%s2 + $0x30] sm:$0xf]
  %v155 = vld [vmem:[%s2 + $0x38] sm:$0xf]
  %v156 = vmul.f32 %v151, %v152
  %v157 = vmul.f32 %v150, %v153
  %v158 = vmul.f32 %v149, %v154
  %v159 = vmul.f32 %v148, %v155
  %160 = vst [vmem:[#allocation2 + $0x20] sm:$0xf] %v156
  %161 = vst [vmem:[#allocation2 + $0x28] sm:$0xf] %v157
  %162 = vst [vmem:[#allocation2 + $0x30] sm:$0xf] %v158
  %163 = vst [vmem:[#allocation2 + $0x38] sm:$0xf] %v159
  %164 = vst [vmem:[#allocation1] ss:$2 sm:$0xff] %v22
  %s165 = scalar_lea.vmem [#allocation1], 16
  %166 = vst [vmem:[%s165] ss:$2 sm:$0xff] %v23
  %v167 = vld.sshfl [vmem:[#allocation1] sm:$0xff pattern:$0x75316420]
  %v168 = vld.sshfl [vmem:[#allocation1 + $0x8] sm:$0xff pattern:$0x75316420]
  %v169 = vld.sshfl [vmem:[#allocation1 + $0x10] sm:$0xff pattern:$0x75316420]
  %v170 = vld.sshfl [vmem:[#allocation1 + $0x18] sm:$0xff pattern:$0x75316420]
  %175 = vrot.lane.b32.xlu0 %v167, 1
  %v176 = vpop.permute.xlu0 %175
  %177 = vrot.lane.b32.xlu0 %v168, 1
  %v178 = vpop.permute.xlu0 %177
  %179 = vrot.lane.b32.xlu0 %v169, 1
  %v180 = vpop.permute.xlu0 %179
  %181 = vrot.lane.b32.xlu0 %v170, 1
  %v182 = vpop.permute.xlu0 %181
  %vm183 = vcmp.lt.s32.totalorder %v50, 1
  %v184 = vsel %vm183, %v180, %v182
  %v185 = vsel %vm183, %v178, %v180
  %v186 = vsel %vm183, %v176, %v178
  %v187 = vsel %vm183, %v182, %v176
  %v188 = vld [vmem:[%s2 + $0x20] sm:$0xf0]
  %v189 = vld [vmem:[%s2 + $0x28] sm:$0xf0]
  %v190 = vld [vmem:[%s2 + $0x30] sm:$0xf0]
  %v191 = vld [vmem:[%s2 + $0x38] sm:$0xf0]
  %v196 = vrot.slane %v188, 4
  %v197 = vrot.slane %v189, 4
  %v198 = vrot.slane %v190, 4
  %v199 = vrot.slane %v191, 4
  %v204 = vmul.f32 %v187, %v196
  %v205 = vmul.f32 %v186, %v197
  %v206 = vmul.f32 %v185, %v198
  %v207 = vmul.f32 %v184, %v199
  %v212 = vrot.slane %v204, 4
  %v213 = vrot.slane %v205, 4
  %v214 = vrot.slane %v206, 4
  %v215 = vrot.slane %v207, 4
  %220 = vst [vmem:[#allocation2 + $0x20] sm:$0xf0] %v212
  %221 = vst [vmem:[#allocation2 + $0x28] sm:$0xf0] %v213
  %222 = vst [vmem:[#allocation2 + $0x30] sm:$0xf0] %v214
  %223 = vst [vmem:[#allocation2 + $0x38] sm:$0xf0] %v215
  %v224 = vld [vmem:[%s2 + $0x40] sm:$0xf]
  %v225 = vld [vmem:[%s2 + $0x48] sm:$0xf]
  %v226 = vld [vmem:[%s2 + $0x50] sm:$0xf]
  %v227 = vld [vmem:[%s2 + $0x58] sm:$0xf]
  %v232 = vrot.slane %v225, 4
  %v233 = vrot.slane %v227, 4
  %vm234 = vcmask 1043456
  %v235 = vsel %vm234, %v224, %v232
  %v236 = vsel %vm234, %v226, %v233
  %v239 = vmul.f32 %v22, %v235
  %v240 = vmul.f32 %v23, %v236
  %243 = vst [vmem:[#allocation1] ss:$2 sm:$0xff] %v239
  %s244 = scalar_lea.vmem [#allocation1], 16
  %245 = vst [vmem:[%s244] ss:$2 sm:$0xff] %v240
  %v246 = vld.sshfl [vmem:[#allocation1] sm:$0xff pattern:$0x75316420]
  %v247 = vld.sshfl [vmem:[#allocation1 + $0x8] sm:$0xff pattern:$0x75316420]
  %v248 = vld.sshfl [vmem:[#allocation1 + $0x10] sm:$0xff pattern:$0x75316420]
  %v249 = vld.sshfl [vmem:[#allocation1 + $0x18] sm:$0xff pattern:$0x75316420]
  %254 = vst [vmem:[#allocation2 + $0x40] sm:$0xf] %v246
  %255 = vst [vmem:[#allocation2 + $0x48] sm:$0xf] %v247
  %256 = vst [vmem:[#allocation2 + $0x50] sm:$0xf] %v248
  %257 = vst [vmem:[#allocation2 + $0x58] sm:$0xf] %v249
  %258 = vst [vmem:[#allocation1] ss:$2 sm:$0xff] %v22
  %s259 = scalar_lea.vmem [#allocation1], 16
  %260 = vst [vmem:[%s259] ss:$2 sm:$0xff] %v23
  %v261 = vld.sshfl [vmem:[#allocation1] sm:$0xff pattern:$0x75316420]
  %v262 = vld.sshfl [vmem:[#allocation1 + $0x8] sm:$0xff pattern:$0x75316420]
  %v263 = vld.sshfl [vmem:[#allocation1 + $0x10] sm:$0xff pattern:$0x75316420]
  %v264 = vld.sshfl [vmem:[#allocation1 + $0x18] sm:$0xff pattern:$0x75316420]
  %269 = vrot.lane.b32.xlu0 %v261, 127
  %v270 = vpop.permute.xlu0 %269
  %271 = vrot.lane.b32.xlu0 %v262, 127
  %v272 = vpop.permute.xlu0 %271
  %273 = vrot.lane.b32.xlu0 %v263, 127
  %v274 = vpop.permute.xlu0 %273
  %275 = vrot.lane.b32.xlu0 %v264, 127
  %v276 = vpop.permute.xlu0 %275
  %vm277 = vcmp.lt.s32.totalorder %v50, 127
  %v278 = vsel %vm277, %v274, %v276
  %v279 = vsel %vm277, %v272, %v274
  %v280 = vsel %vm277, %v270, %v272
  %v281 = vsel %vm277, %v276, %v270
  %v282 = vld [vmem:[%s2 + $0x40] sm:$0xf0]
  %v283 = vld [vmem:[%s2 + $0x48] sm:$0xf0]
  %v284 = vld [vmem:[%s2 + $0x50] sm:$0xf0]
  %v285 = vld [vmem:[%s2 + $0x58] sm:$0xf0]
  %v290 = vrot.slane %v282, 4
  %v291 = vrot.slane %v283, 4
  %v292 = vrot.slane %v284, 4
  %v293 = vrot.slane %v285, 4
  %v298 = vmul.f32 %v280, %v290
  %v299 = vmul.f32 %v279, %v291
  %v300 = vmul.f32 %v278, %v292
  %v301 = vmul.f32 %v281, %v293
  %v306 = vrot.slane %v298, 4
  %v307 = vrot.slane %v299, 4
  %v308 = vrot.slane %v300, 4
  %v309 = vrot.slane %v301, 4
  %314 = vst [vmem:[#allocation2 + $0x40] sm:$0xf0] %v306
  %315 = vst [vmem:[#allocation2 + $0x48] sm:$0xf0] %v307
  %316 = vst [vmem:[#allocation2 + $0x50] sm:$0xf0] %v308
  %317 = vst [vmem:[#allocation2 + $0x58] sm:$0xf0] %v309
  %318 = vst [vmem:[#allocation1] ss:$2 sm:$0xff] %v22
  %s319 = scalar_lea.vmem [#allocation1], 16
  %320 = vst [vmem:[%s319] ss:$2 sm:$0xff] %v23
  %v321 = vld.sshfl [vmem:[#allocation1] sm:$0xff pattern:$0x75316420]
  %v322 = vld.sshfl [vmem:[#allocation1 + $0x8] sm:$0xff pattern:$0x75316420]
  %v323 = vld.sshfl [vmem:[#allocation1 + $0x10] sm:$0xff pattern:$0x75316420]
  %v324 = vld.sshfl [vmem:[#allocation1 + $0x18] sm:$0xff pattern:$0x75316420]
  %329 = vrot.lane.b32.xlu0 %v321, 113
  %v330 = vpop.permute.xlu0 %329
  %331 = vrot.lane.b32.xlu0 %v322, 113
  %v332 = vpop.permute.xlu0 %331
  %333 = vrot.lane.b32.xlu0 %v323, 113
  %v334 = vpop.permute.xlu0 %333
  %335 = vrot.lane.b32.xlu0 %v324, 113
  %v336 = vpop.permute.xlu0 %335
  %vm337 = vcmp.lt.s32.totalorder %v50, 113
  %v338 = vsel %vm337, %v334, %v336
  %v339 = vsel %vm337, %v332, %v334
  %v340 = vsel %vm337, %v330, %v332
  %v341 = vsel %vm337, %v336, %v330
  %v342 = vld [vmem:[%s2 + $0x60] sm:$0xf]
  %v343 = vld [vmem:[%s2 + $0x68] sm:$0xf]
  %v344 = vld [vmem:[%s2 + $0x70] sm:$0xf]
  %v345 = vld [vmem:[%s2 + $0x78] sm:$0xf]
  %v346 = vmul.f32 %v340, %v342
  %v347 = vmul.f32 %v339, %v343
  %v348 = vmul.f32 %v338, %v344
  %v349 = vmul.f32 %v341, %v345
  %350 = vst [vmem:[#allocation2 + $0x60] sm:$0xf] %v346
  %351 = vst [vmem:[#allocation2 + $0x68] sm:$0xf] %v347
  %352 = vst [vmem:[#allocation2 + $0x70] sm:$0xf] %v348
  %353 = vst [vmem:[#allocation2 + $0x78] sm:$0xf] %v349
  %354 = vst [vmem:[#allocation1] ss:$2 sm:$0xff] %v22
  %s355 = scalar_lea.vmem [#allocation1], 16
  %356 = vst [vmem:[%s355] ss:$2 sm:$0xff] %v23
  %v357 = vld.sshfl [vmem:[#allocation1] sm:$0xff pattern:$0x75316420]
  %v358 = vld.sshfl [vmem:[#allocation1 + $0x8] sm:$0xff pattern:$0x75316420]
  %v359 = vld.sshfl [vmem:[#allocation1 + $0x10] sm:$0xff pattern:$0x75316420]
  %v360 = vld.sshfl [vmem:[#allocation1 + $0x18] sm:$0xff pattern:$0x75316420]
  %365 = vrot.lane.b32.xlu0 %v357, 112
  %v366 = vpop.permute.xlu0 %365
  %367 = vrot.lane.b32.xlu0 %v358, 112
  %v368 = vpop.permute.xlu0 %367
  %369 = vrot.lane.b32.xlu0 %v359, 112
  %v370 = vpop.permute.xlu0 %369
  %371 = vrot.lane.b32.xlu0 %v360, 112
  %v372 = vpop.permute.xlu0 %371
  %vm373 = vcmp.lt.s32.totalorder %v50, 112
  %v374 = vsel %vm373, %v370, %v372
  %v375 = vsel %vm373, %v368, %v370
  %v376 = vsel %vm373, %v366, %v368
  %v377 = vsel %vm373, %v372, %v366
  %v378 = vld [vmem:[%s2 + $0x60] sm:$0xf0]
  %v379 = vld [vmem:[%s2 + $0x68] sm:$0xf0]
  %v380 = vld [vmem:[%s2 + $0x70] sm:$0xf0]
  %v381 = vld [vmem:[%s2 + $0x78] sm:$0xf0]
  %v386 = vrot.slane %v378, 4
  %v387 = vrot.slane %v379, 4
  %v388 = vrot.slane %v380, 4
  %v389 = vrot.slane %v381, 4
  %v394 = vmul.f32 %v376, %v386
  %v395 = vmul.f32 %v375, %v387
  %v396 = vmul.f32 %v374, %v388
  %v397 = vmul.f32 %v377, %v389
  %v402 = vrot.slane %v394, 4
  %v403 = vrot.slane %v395, 4
  %v404 = vrot.slane %v396, 4
  %v405 = vrot.slane %v397, 4
  %410 = vst [vmem:[#allocation2 + $0x60] sm:$0xf0] %v402
  %411 = vst [vmem:[#allocation2 + $0x68] sm:$0xf0] %v403
  %412 = vst [vmem:[#allocation2 + $0x70] sm:$0xf0] %v404
  %413 = vst [vmem:[#allocation2 + $0x78] sm:$0xf0] %v405
  %414 = vst [vmem:[#allocation1] ss:$2 sm:$0xff] %v22
  %s415 = scalar_lea.vmem [#allocation1], 16
  %416 = vst [vmem:[%s415] ss:$2 sm:$0xff] %v23
  %v417 = vld.sshfl [vmem:[#allocation1] sm:$0xff pattern:$0x75316420]
  %v418 = vld.sshfl [vmem:[#allocation1 + $0x8] sm:$0xff pattern:$0x75316420]
  %v419 = vld.sshfl [vmem:[#allocation1 + $0x10] sm:$0xff pattern:$0x75316420]
  %v420 = vld.sshfl [vmem:[#allocation1 + $0x18] sm:$0xff pattern:$0x75316420]
  %425 = vrot.lane.b32.xlu0 %v417, 111
  %v426 = vpop.permute.xlu0 %425
  %427 = vrot.lane.b32.xlu0 %v418, 111
  %v428 = vpop.permute.xlu0 %427
  %429 = vrot.lane.b32.xlu0 %v419, 111
  %v430 = vpop.permute.xlu0 %429
  %431 = vrot.lane.b32.xlu0 %v420, 111
  %v432 = vpop.permute.xlu0 %431
  %vm433 = vcmp.lt.s32.totalorder %v50, 111
  %v434 = vsel %vm433, %v430, %v432
  %v435 = vsel %vm433, %v428, %v430
  %v436 = vsel %vm433, %v426, %v428
  %v437 = vsel %vm433, %v432, %v426
  %v438 = vld [vmem:[%s2 + $0x80] sm:$0xf]
  %v439 = vld [vmem:[%s2 + $0x88] sm:$0xf]
  %v440 = vld [vmem:[%s2 + $0x90] sm:$0xf]
  %v441 = vld [vmem:[%s2 + $0x98] sm:$0xf]
  %v442 = vmul.f32 %v436, %v438
  %v443 = vmul.f32 %v435, %v439
  %v444 = vmul.f32 %v434, %v440
  %v445 = vmul.f32 %v437, %v441
  %446 = vst [vmem:[#allocation2 + $0x80] sm:$0xf] %v442
  %447 = vst [vmem:[#allocation2 + $0x88] sm:$0xf] %v443
  %448 = vst [vmem:[#allocation2 + $0x90] sm:$0xf] %v444
  %449 = vst [vmem:[#allocation2 + $0x98] sm:$0xf] %v445
  %v450 = vld [vmem:[%s1] sm:$0xf]
  %v451 = vld [vmem:[#allocation2] sm:$0xff]
  %v452 = vld [vmem:[#allocation2 + $0x8] sm:$0xff]
  %v453 = vld [vmem:[#allocation2 + $0x10] sm:$0xff]
  %v454 = vld [vmem:[#allocation2 + $0x18] sm:$0xff]
  %v455 = vld [vmem:[#allocation2 + $0x20] sm:$0xff]
  %v456 = vld [vmem:[#allocation2 + $0x28] sm:$0xff]
  %v457 = vld [vmem:[#allocation2 + $0x30] sm:$0xff]
  %v458 = vld [vmem:[#allocation2 + $0x38] sm:$0xff]
  %v459 = vld [vmem:[#allocation2 + $0x40] sm:$0xff]
  %v460 = vld [vmem:[#allocation2 + $0x48] sm:$0xff]
  %v461 = vld [vmem:[#allocation2 + $0x50] sm:$0xff]
  %v462 = vld [vmem:[#allocation2 + $0x58] sm:$0xff]
  %v463 = vld [vmem:[#allocation2 + $0x60] sm:$0xff]
  %v464 = vld [vmem:[#allocation2 + $0x68] sm:$0xff]
  %v465 = vld [vmem:[#allocation2 + $0x70] sm:$0xff]
  %v466 = vld [vmem:[#allocation2 + $0x78] sm:$0xff]
  %v467 = vld [vmem:[#allocation2 + $0x80] sm:$0xff]
  %v468 = vld [vmem:[#allocation2 + $0x88] sm:$0xff]
  %v469 = vld [vmem:[#allocation2 + $0x90] sm:$0xff]
  %v470 = vld [vmem:[#allocation2 + $0x98] sm:$0xff]
  %v471 = vpack.c.bf16 %v455, %v451
  %v472 = vpack.c.bf16 %v456, %v452
  %v473 = vpack.c.bf16 %v457, %v453
  %v474 = vpack.c.bf16 %v458, %v454
  %v475 = vpack.c.bf16 %v463, %v459
  %v476 = vpack.c.bf16 %v464, %v460
  %v477 = vpack.c.bf16 %v465, %v461
  %v478 = vpack.c.bf16 %v466, %v462
  %v479 = vpack.c.bf16 %v467, %v467
  %v480 = vpack.c.bf16 %v468, %v468
  %v481 = vpack.c.bf16 %v469, %v469
  %v482 = vpack.c.bf16 %v470, %v470
  %vm483 = vcmask 326656
  %v485 = vsel %vm483, %v450, 0
  %v488 = vsel %vm234, %v479, 0
  %v491 = vsel %vm234, %v480, 0
  %v494 = vsel %vm234, %v481, 0
  %v497 = vsel %vm234, %v482, 0
  %499 = vmatpush.bf16.msra.mxu0 0
  %500 = vmatpush.bf16.msra.mxu0 0
  %501 = vmatpush.bf16.msra.mxu0 0
  %502 = vmatpush.bf16.msra.mxu0 0
  %503 = vmatpush.bf16.msra.mxu0 0
  %504 = vmatpush.bf16.msra.mxu0 %v488
  %505 = vmatpush.bf16.msra.mxu0 %v475
  %506 = vmatpush.bf16.msra.mxu0 %v471
  %507 = vmatmul.bf16.gmra.mxu0 %v485
  %v508 = vpop.f32.mrf.mxu0
  %v509 = vadd.f32 0.0, %v508
  %v510 = vpop.f32.mrf.mxu0
  %511 = vdwg.mxu0
  %512 = vmatpush.bf16.msra.mxu0 0
  %513 = vmatpush.bf16.msra.mxu0 0
  %514 = vmatpush.bf16.msra.mxu0 0
  %515 = vmatpush.bf16.msra.mxu0 0
  %516 = vmatpush.bf16.msra.mxu0 0
  %517 = vmatpush.bf16.msra.mxu0 %v491
  %518 = vmatpush.bf16.msra.mxu0 %v476
  %519 = vmatpush.bf16.msra.mxu0 %v472
  %520 = vmatmul.bf16.gmra.mxu0 %v485
  %v521 = vpop.f32.mrf.mxu0
  %v522 = vadd.f32 0.0, %v521
  %v523 = vpop.f32.mrf.mxu0
  %524 = vdwg.mxu0
  %525 = vmatpush.bf16.msra.mxu0 0
  %526 = vmatpush.bf16.msra.mxu0 0
  %527 = vmatpush.bf16.msra.mxu0 0
  %528 = vmatpush.bf16.msra.mxu0 0
  %529 = vmatpush.bf16.msra.mxu0 0
  %530 = vmatpush.bf16.msra.mxu0 %v494
  %531 = vmatpush.bf16.msra.mxu0 %v477
  %532 = vmatpush.bf16.msra.mxu0 %v473
  %533 = vmatmul.bf16.gmra.mxu0 %v485
  %v534 = vpop.f32.mrf.mxu0
  %v535 = vadd.f32 0.0, %v534
  %v536 = vpop.f32.mrf.mxu0
  %537 = vdwg.mxu0
  %538 = vmatpush.bf16.msra.mxu0 0
  %539 = vmatpush.bf16.msra.mxu0 0
  %540 = vmatpush.bf16.msra.mxu0 0
  %541 = vmatpush.bf16.msra.mxu0 0
  %542 = vmatpush.bf16.msra.mxu0 0
  %543 = vmatpush.bf16.msra.mxu0 %v497
  %544 = vmatpush.bf16.msra.mxu0 %v478
  %545 = vmatpush.bf16.msra.mxu0 %v474
  %546 = vmatmul.bf16.gmra.mxu0 %v485
  %v547 = vpop.f32.mrf.mxu0
  %v548 = vadd.f32 0.0, %v547
  %v549 = vpop.f32.mrf.mxu0
  %550 = vdwg.mxu0
  %551 = vrot.lane.b32.xlu0 %v509, 127
  %v552 = vpop.permute.xlu0 %551
  %553 = vrot.lane.b32.xlu0 %v522, 127
  %v554 = vpop.permute.xlu0 %553
  %555 = vrot.lane.b32.xlu0 %v535, 127
  %v556 = vpop.permute.xlu0 %555
  %557 = vrot.lane.b32.xlu0 %v548, 127
  %v558 = vpop.permute.xlu0 %557
  %v559 = vsel %vm277, %v556, %v558
  %v560 = vsel %vm277, %v554, %v556
  %v561 = vsel %vm277, %v552, %v554
  %v562 = vsel %vm277, %v558, %v552
  %563 = vrot.lane.b32.xlu0 %v509, 112
  %v564 = vpop.permute.xlu0 %563
  %565 = vrot.lane.b32.xlu0 %v522, 112
  %v566 = vpop.permute.xlu0 %565
  %567 = vrot.lane.b32.xlu0 %v535, 112
  %v568 = vpop.permute.xlu0 %567
  %569 = vrot.lane.b32.xlu0 %v548, 112
  %v570 = vpop.permute.xlu0 %569
  %v571 = vsel %vm373, %v568, %v570
  %v572 = vsel %vm373, %v566, %v568
  %v573 = vsel %vm373, %v564, %v566
  %v574 = vsel %vm373, %v570, %v564
  %575 = vrot.lane.b32.xlu0 %v509, 111
  %v576 = vpop.permute.xlu0 %575
  %577 = vrot.lane.b32.xlu0 %v522, 111
  %v578 = vpop.permute.xlu0 %577
  %579 = vrot.lane.b32.xlu0 %v535, 111
  %v580 = vpop.permute.xlu0 %579
  %581 = vrot.lane.b32.xlu0 %v548, 111
  %v582 = vpop.permute.xlu0 %581
  %v583 = vsel %vm433, %v580, %v582
  %v584 = vsel %vm433, %v578, %v580
  %v585 = vsel %vm433, %v576, %v578
  %v586 = vsel %vm433, %v582, %v576
  %v587 = vadd.f32 %v509, %v561
  %v588 = vadd.f32 %v522, %v560
  %v589 = vadd.f32 %v535, %v559
  %v590 = vadd.f32 %v548, %v562
  %v591 = vadd.f32 %v573, %v585
  %v592 = vadd.f32 %v572, %v584
  %v593 = vadd.f32 %v571, %v583
  %v594 = vadd.f32 %v574, %v586
  %v595 = vadd.f32 %v587, %v591
  %v596 = vadd.f32 %v588, %v592
  %v597 = vadd.f32 %v589, %v593
  %v598 = vadd.f32 %v590, %v594
  %v599 = vld [vmem:[%s3] sm:$0xff]
  %v600 = vld [vmem:[%s3 + $0x8] sm:$0xff]
  %v601 = vld [vmem:[%s3 + $0x10] sm:$0xff]
  %v602 = vld [vmem:[%s3 + $0x18] sm:$0xff]
  %v603 = vld [vmem:[%s3 + $0x20] sm:$0xff]
  %v604 = vld [vmem:[%s3 + $0x28] sm:$0xff]
  %v605 = vld [vmem:[%s3 + $0x30] sm:$0xff]
  %v606 = vld [vmem:[%s3 + $0x38] sm:$0xff]
  %v607 = vld [vmem:[%s3 + $0x40] sm:$0xff]
  %v608 = vld [vmem:[%s3 + $0x48] sm:$0xff]
  %v609 = vld [vmem:[%s3 + $0x50] sm:$0xff]
  %v610 = vld [vmem:[%s3 + $0x58] sm:$0xff]
  %v611 = vld [vmem:[%s3 + $0x60] sm:$0xff]
  %v612 = vld [vmem:[%s3 + $0x68] sm:$0xff]
  %v613 = vld [vmem:[%s3 + $0x70] sm:$0xff]
  %v614 = vld [vmem:[%s3 + $0x78] sm:$0xff]
  %v615 = vld [vmem:[%s3 + $0x80] sm:$0xff]
  %v616 = vld [vmem:[%s3 + $0x88] sm:$0xff]
  %v617 = vld [vmem:[%s3 + $0x90] sm:$0xff]
  %v618 = vld [vmem:[%s3 + $0x98] sm:$0xff]
  %v619 = vld [vmem:[%s3 + $0xa0] sm:$0xff]
  %v620 = vld [vmem:[%s3 + $0xa8] sm:$0xff]
  %v621 = vld [vmem:[%s3 + $0xb0] sm:$0xff]
  %v622 = vld [vmem:[%s3 + $0xb8] sm:$0xff]
  %v623 = vld [vmem:[%s3 + $0xc0] sm:$0xff]
  %v624 = vld [vmem:[%s3 + $0xc8] sm:$0xff]
  %v625 = vld [vmem:[%s3 + $0xd0] sm:$0xff]
  %v626 = vld [vmem:[%s3 + $0xd8] sm:$0xff]
  %v627 = vld [vmem:[%s3 + $0xe0] sm:$0xff]
  %v628 = vld [vmem:[%s3 + $0xe8] sm:$0xff]
  %v629 = vld [vmem:[%s3 + $0xf0] sm:$0xff]
  %v630 = vld [vmem:[%s3 + $0xf8] sm:$0xff]
  %v631 = vld [vmem:[%s3 + $0x100] sm:$0xff]
  %v632 = vld [vmem:[%s3 + $0x108] sm:$0xff]
  %v633 = vld [vmem:[%s3 + $0x110] sm:$0xff]
  %v634 = vld [vmem:[%s3 + $0x118] sm:$0xff]
  %v635 = vld [vmem:[%s3 + $0x120] sm:$0xff]
  %v636 = vld [vmem:[%s3 + $0x128] sm:$0xff]
  %v637 = vld [vmem:[%s3 + $0x130] sm:$0xff]
  %v638 = vld [vmem:[%s3 + $0x138] sm:$0xff]
  %v639 = vld [vmem:[%s3 + $0x140] sm:$0xff]
  %v640 = vld [vmem:[%s3 + $0x148] sm:$0xff]
  %v641 = vld [vmem:[%s3 + $0x150] sm:$0xff]
  %v642 = vld [vmem:[%s3 + $0x158] sm:$0xff]
  %v643 = vld [vmem:[%s3 + $0x160] sm:$0xff]
  %v644 = vld [vmem:[%s3 + $0x168] sm:$0xff]
  %v645 = vld [vmem:[%s3 + $0x170] sm:$0xff]
  %v646 = vld [vmem:[%s3 + $0x178] sm:$0xff]
  %v647 = vld [vmem:[%s3 + $0x180] sm:$0xff]
  %v648 = vld [vmem:[%s3 + $0x188] sm:$0xff]
  %v649 = vld [vmem:[%s3 + $0x190] sm:$0xff]
  %v650 = vld [vmem:[%s3 + $0x198] sm:$0xff]
  %v651 = vld [vmem:[%s3 + $0x1a0] sm:$0xff]
  %v652 = vld [vmem:[%s3 + $0x1a8] sm:$0xff]
  %v653 = vld [vmem:[%s3 + $0x1b0] sm:$0xff]
  %v654 = vld [vmem:[%s3 + $0x1b8] sm:$0xff]
  %v655 = vld [vmem:[%s3 + $0x1c0] sm:$0xff]
  %v656 = vld [vmem:[%s3 + $0x1c8] sm:$0xff]
  %v657 = vld [vmem:[%s3 + $0x1d0] sm:$0xff]
  %v658 = vld [vmem:[%s3 + $0x1d8] sm:$0xff]
  %v659 = vld [vmem:[%s3 + $0x1e0] sm:$0xff]
  %v660 = vld [vmem:[%s3 + $0x1e8] sm:$0xff]
  %v661 = vld [vmem:[%s3 + $0x1f0] sm:$0xff]
  %v662 = vld [vmem:[%s3 + $0x1f8] sm:$0xff]
  %v663 = vld [vmem:[%s4] sm:$0xff]
  %v664 = vld [vmem:[%s4 + $0x8] sm:$0xff]
  %v665 = vld [vmem:[%s4 + $0x10] sm:$0xff]
  %v666 = vld [vmem:[%s4 + $0x18] sm:$0xff]
  %v667 = vld [vmem:[%s4 + $0x20] sm:$0xff]
  %v668 = vld [vmem:[%s4 + $0x28] sm:$0xff]
  %v669 = vld [vmem:[%s4 + $0x30] sm:$0xff]
  %v670 = vld [vmem:[%s4 + $0x38] sm:$0xff]
  %v671 = vld [vmem:[%s4 + $0x40] sm:$0xff]
  %v672 = vld [vmem:[%s4 + $0x48] sm:$0xff]
  %v673 = vld [vmem:[%s4 + $0x50] sm:$0xff]
  %v674 = vld [vmem:[%s4 + $0x58] sm:$0xff]
  %v675 = vld [vmem:[%s4 + $0x60] sm:$0xff]
  %v676 = vld [vmem:[%s4 + $0x68] sm:$0xff]
  %v677 = vld [vmem:[%s4 + $0x70] sm:$0xff]
  %v678 = vld [vmem:[%s4 + $0x78] sm:$0xff]
  %679 = vmatpush.msra.mxu0 %v614
  %680 = vmatpush.msra.mxu0 %v613
  %681 = vmatpush.msra.mxu0 %v612
  %682 = vmatpush.msra.mxu0 %v611
  %683 = vmatpush.msra.mxu0 %v610
  %684 = vmatpush.msra.mxu0 %v609
  %685 = vmatpush.msra.mxu0 %v608
  %686 = vmatpush.msra.mxu0 %v607
  %687 = vmatpush.msra.mxu0 %v606
  %688 = vmatpush.msra.mxu0 %v605
  %689 = vmatpush.msra.mxu0 %v604
  %690 = vmatpush.msra.mxu0 %v603
  %691 = vmatpush.msra.mxu0 %v602
  %692 = vmatpush.msra.mxu0 %v601
  %693 = vmatpush.msra.mxu0 %v600
  %694 = vmatpush.msra.mxu0 %v599
  %695 = vmatmul.f32.gmra.mxu0 %v595
  %v696 = vpop.f32.mrf.mxu0
  %v697 = vadd.f32 0.0, %v696
  %698 = vdwg.mxu0
  %699 = vmatpush.msra.mxu0 %v630
  %700 = vmatpush.msra.mxu0 %v629
  %701 = vmatpush.msra.mxu0 %v628
  %702 = vmatpush.msra.mxu0 %v627
  %703 = vmatpush.msra.mxu0 %v626
  %704 = vmatpush.msra.mxu0 %v625
  %705 = vmatpush.msra.mxu0 %v624
  %706 = vmatpush.msra.mxu0 %v623
  %707 = vmatpush.msra.mxu0 %v622
  %708 = vmatpush.msra.mxu0 %v621
  %709 = vmatpush.msra.mxu0 %v620
  %710 = vmatpush.msra.mxu0 %v619
  %711 = vmatpush.msra.mxu0 %v618
  %712 = vmatpush.msra.mxu0 %v617
  %713 = vmatpush.msra.mxu0 %v616
  %714 = vmatpush.msra.mxu0 %v615
  %715 = vmatmul.f32.gmra.mxu0 %v596
  %v716 = vpop.f32.mrf.mxu0
  %v717 = vadd.f32 %v697, %v716
  %718 = vdwg.mxu0
  %719 = vmatpush.msra.mxu0 %v646
  %720 = vmatpush.msra.mxu0 %v645
  %721 = vmatpush.msra.mxu0 %v644
  %722 = vmatpush.msra.mxu0 %v643
  %723 = vmatpush.msra.mxu0 %v642
  %724 = vmatpush.msra.mxu0 %v641
  %725 = vmatpush.msra.mxu0 %v640
  %726 = vmatpush.msra.mxu0 %v639
  %727 = vmatpush.msra.mxu0 %v638
  %728 = vmatpush.msra.mxu0 %v637
  %729 = vmatpush.msra.mxu0 %v636
  %730 = vmatpush.msra.mxu0 %v635
  %731 = vmatpush.msra.mxu0 %v634
  %732 = vmatpush.msra.mxu0 %v633
  %733 = vmatpush.msra.mxu0 %v632
  %734 = vmatpush.msra.mxu0 %v631
  %735 = vmatmul.f32.gmra.mxu0 %v597
  %v736 = vpop.f32.mrf.mxu0
  %v737 = vadd.f32 %v717, %v736
  %738 = vdwg.mxu0
  %739 = vmatpush.msra.mxu0 %v662
  %740 = vmatpush.msra.mxu0 %v661
  %741 = vmatpush.msra.mxu0 %v660
  %742 = vmatpush.msra.mxu0 %v659
  %743 = vmatpush.msra.mxu0 %v658
  %744 = vmatpush.msra.mxu0 %v657
  %745 = vmatpush.msra.mxu0 %v656
  %746 = vmatpush.msra.mxu0 %v655
  %747 = vmatpush.msra.mxu0 %v654
  %748 = vmatpush.msra.mxu0 %v653
  %749 = vmatpush.msra.mxu0 %v652
  %750 = vmatpush.msra.mxu0 %v651
  %751 = vmatpush.msra.mxu0 %v650
  %752 = vmatpush.msra.mxu0 %v649
  %753 = vmatpush.msra.mxu0 %v648
  %754 = vmatpush.msra.mxu0 %v647
  %755 = vmatmul.f32.gmra.mxu0 %v598
  %v756 = vpop.f32.mrf.mxu0
  %v757 = vadd.f32 %v737, %v756
  %758 = vdwg.mxu0
  %v759 = vmul.f32 %v757, %v757
  %760 = vmatpush.msra.mxu0 %v678
  %761 = vmatpush.msra.mxu0 %v677
  %762 = vmatpush.msra.mxu0 %v676
  %763 = vmatpush.msra.mxu0 %v675
  %764 = vmatpush.msra.mxu0 %v674
  %765 = vmatpush.msra.mxu0 %v673
  %766 = vmatpush.msra.mxu0 %v672
  %767 = vmatpush.msra.mxu0 %v671
  %768 = vmatpush.msra.mxu0 %v670
  %769 = vmatpush.msra.mxu0 %v669
  %770 = vmatpush.msra.mxu0 %v668
  %771 = vmatpush.msra.mxu0 %v667
  %772 = vmatpush.msra.mxu0 %v666
  %773 = vmatpush.msra.mxu0 %v665
  %774 = vmatpush.msra.mxu0 %v664
  %775 = vmatpush.msra.mxu0 %v663
  %776 = vmatmul.f32.gmra.mxu0 %v757
  %v777 = vpop.f32.mrf.mxu0
  %v778 = vadd.f32 0.0, %v777
  %779 = vmatmul.f32.gmra.mxu0 %v759
  %v780 = vpop.f32.mrf.mxu0
  %v781 = vadd.f32 0.0, %v780
  %782 = vdwg.mxu0
  %v783 = vmul.f32 %v778, %v778
  %v784 = vsub.f32 %v781, %v783
  %v785 = vmax.f32 %v784, 0.0
  %v786 = vsub.f32 %v757, %v778
  %v787 = vadd.f32 %v785, 1e-05
  %v788 = vrsqrt.pop %v787
  %v789 = vmul.f32 %v788, %v787
  %v790 = vmul.f32 %v789, %v788
  %v791 = vmul.f32 0.5, %v790
  %v792 = vsub.f32 1.5, %v791
  %v793 = vmul.f32 %v788, %v792
  %vm794 = vweird.f32 %v787
  %vm795 = vweird.f32 %v788
  %vm796 = vmor %vm794, %vm795
  %v797 = vsel %vm796, %v788, %v793
  %v798 = vmul.f32 %v786, %v797
  %vm799 = vcmp.ge.f32.partialorder %v798, 0.0
  %v800 = vmul.f32 %v798, 0.01
  %v801 = vsel %vm799, %v798, %v800
  %802 = vst [vmem:[%s5] sm:$0xff] %v801
  // Predicated region
  $region22: #{cnn_maxpool2d_forward.1} parent=0 // pred_check
    _
  $region23: #{cnn_maxpool2d_forward.1} parent=0 // pred_check_branch
    %804 = sbr.rel (0) target = $region25
  $region24: #{cnn_maxpool2d_forward.1} parent=0 // pred_region
    _
  $region25: #{cnn_maxpool2d_forward.1} parent=0 // pred_fallthru
    _
  // Predicated region
  $region26: #{cnn_maxpool2d_forward.1} parent=0 // pred_check
    _
  $region27: #{cnn_maxpool2d_forward.1} parent=0 // pred_check_branch
    %806 = sbr.rel (0) target = $region29
  $region28: #{cnn_maxpool2d_forward.1} parent=0 // pred_region
    _
  $region29: #{cnn_maxpool2d_forward.1} parent=0 // pred_fallthru
    _

</llo_original>
